<compile_context>
chip_gen: v7x
topology: tpu7x:2x2x1
jax: 0.10.0
libtpu: 0.0.40
codegen_flags: <defaults>
</compile_context>

<pallas_src>
import jax
import jax.numpy as jnp
import numpy as np
from jax.experimental import pallas as pl
from jax.experimental.pallas import tpu as pltpu


def _round_up(x: int, m: int) -> int:
    return ((x + m - 1) // m) * m


def _make_yolo_kernel(stride, nx, tile_s, na, no, anchors, spatial_axis):
    """YOLO decode: channel-major compute, channel-last store (XLU transpose)."""
    stride = float(stride)
    nx_f = float(nx)
    anchors = [(float(w), float(h)) for (w, h) in np.asarray(anchors)]
    no_pad = _round_up(no, 8)        # sublane multiple  -> fully aligned transpose
    t_pad = _round_up(tile_s, 128)   # lane multiple     -> fully aligned transpose

    def kernel(p_ref, io_ref):
        # p_ref : (1, na, no, tile_s)   channel-major block (lane-dense spatial)
        # io_ref: (1, na, tile_s, no)   channel-last block
        s0 = pl.program_id(spatial_axis) * tile_s

        # Shared across anchors (hoisted out of the unrolled anchor loop).
        rowm = jax.lax.broadcasted_iota(jnp.int32, (no, tile_s), 0)
        lane = jax.lax.broadcasted_iota(jnp.int32, (no, tile_s), 1)
        lin = (s0 + lane).astype(jnp.float32)            # flattened spatial index
        gy = jnp.floor(lin / nx_f)                       # exact: S << 2**24
        gx = lin - gy * nx_f
        grid_s = jnp.where(rowm == 0, gx, gy) * stride   # rows >= 2 unused
        is_wh = jnp.logical_and(rowm >= 2, rowm < 4)
        is_xy = rowm < 2

        for a in range(na):                              # static unroll, na small
            aw, ah = anchors[a]
            anc = jnp.where(rowm == 2, aw, ah)           # row 2 -> w, row 3 -> h
            pf = p_ref[0, a, :, :].astype(jnp.float32)   # (no, tile_s)

            # One EUP op per element: exp(p) for wh rows, exp(-p) elsewhere
            # (sigmoid(p) = 1 / (1 + exp(-p))).
            e = jnp.exp(jnp.where(is_wh, pf, -pf))
            val = jnp.where(is_wh, e * anc, 1.0 / (1.0 + e))
            # xy rows: (sigmoid + grid) * stride ; wh rows: exp * raw_anchor
            out_cm = jnp.where(is_xy, val * stride + grid_s, val)   # (no, tile_s)

            # Pad to native (8,128) tiles so the XLU transpose is the fully
            # aligned case, then emit the channel-last tile with one store.
            if no_pad != no:
                out_cm = jnp.concatenate(
                    [out_cm, jnp.zeros((no_pad - no, tile_s), jnp.float32)], axis=0)
            if t_pad != tile_s:
                out_cm = jnp.concatenate(
                    [out_cm, jnp.zeros((no_pad, t_pad - tile_s), jnp.float32)], axis=1)
            out_cl = jnp.transpose(out_cm)               # (t_pad, no_pad), XLU
            io_ref[0, a, :, :] = out_cl[:tile_s, :no].astype(io_ref.dtype)

    return kernel


def _pick_spatial_tile(S, na, no, itemsize, budget_bytes):
    """Largest spatial tile fitting the VMEM budget; tile_s == S if it fits."""
    per_col = 2 * 2 * na * no * itemsize          # in + out blocks, double-buffered
    cap = max(128, budget_bytes // per_col)
    if S <= cap:
        return S                                  # single fully-contiguous block
    t = (cap // 128) * 128
    while t >= 128:                               # largest 128-multiple divisor of S
        if S % t == 0:
            return t
        t -= 128
    # No 128-aligned divisor (non-128-aligned S): fall back to one full-S block;
    # the caller raises vmem_limit_bytes when this footprint is large.
    return S


class YOLOLayerPallas:
    """Inference-mode forward of yolov3 YOLOLayer (ASFF=False, ONNX_EXPORT=False)."""

    def __init__(self, anchors, nc, img_size, yolo_index, layers,
                 vmem_budget_bytes=12 * 1024 * 1024):
        self.anchors = np.asarray(anchors, dtype=np.float32)  # raw anchors (na, 2)
        self.index = yolo_index
        self.layers = layers
        self.nl = len(layers)
        self.na = len(anchors)
        self.nc = nc
        self.no = nc + 5
        self.vmem_budget_bytes = int(vmem_budget_bytes)

    def __call__(self, p, img_size, out=None, return_p=False):
        # TODO(synk): ASFF fusion branch (needs other layers' outputs + bilinear
        # interpolate) and the ONNX_EXPORT branch are not implemented.
        bs, ch, ny, nx = p.shape
        assert ch == self.na * self.no, "channel dim must equal na * (nc + 5)"

        # create_grids equivalent; stride is a compile-time constant (shapes
        # already force a recompile per head / resolution).
        # TODO(synk): pass stride via SMEM if img_size ever becomes a tracer.
        img_sz = max(img_size)
        stride = float(img_sz) / float(max(nx, ny))

        S = ny * nx
        itemsize = p.dtype.itemsize
        # Channel-major view (contiguous reshape, zero data movement).
        p_cm = p.reshape(bs, self.na, self.no, S)

        tile_s = _pick_spatial_tile(S, self.na, self.no, itemsize,
                                    self.vmem_budget_bytes)
        n_s = pl.cdiv(S, tile_s)        # tile_s divides S (or equals S) by construction

        # Put the larger parallel extent first (more for v7x megacore to split).
        spatial_first = n_s > bs
        if spatial_first:
            grid = (n_s, bs)
            in_map = lambda s, b: (b, 0, 0, s)
            out_map = lambda s, b: (b, 0, s, 0)
        else:
            grid = (bs, n_s)
            in_map = lambda b, s: (b, 0, 0, s)
            out_map = lambda b, s: (b, 0, s, 0)

        kernel = _make_yolo_kernel(stride, nx, tile_s, self.na, self.no,
                                   self.anchors, 0 if spatial_first else 1)

        # VMEM footprint: in+out blocks double-buffered + f32 intermediates.
        block_bytes = self.na * self.no * tile_s * itemsize
        no_pad = _round_up(self.no, 8)
        t_pad = _round_up(tile_s, 128)
        est = 4 * block_bytes + 6 * no_pad * t_pad * 4
        cp_kwargs = dict(dimension_semantics=("parallel", "parallel"))
        if est > (16 << 20):                       # beyond v5e default scoped VMEM
            cp_kwargs["vmem_limit_bytes"] = int(min(est + (8 << 20), 56 << 20))

        n_elem = bs * self.na * self.no * S
        cost = pl.CostEstimate(flops=6 * n_elem, transcendentals=n_elem,
                               bytes_accessed=2 * n_elem * itemsize)

        io4 = pl.pallas_call(
            kernel,
            out_shape=jax.ShapeDtypeStruct((bs, self.na, S, self.no), p.dtype),
            grid=grid,
            in_specs=[pl.BlockSpec((1, self.na, self.no, tile_s), in_map)],
            out_specs=pl.BlockSpec((1, self.na, tile_s, self.no), out_map),
            compiler_params=pltpu.CompilerParams(**cp_kwargs),
            cost_estimate=cost,
        )(p_cm)

        # Channel-last module API shape: contiguous reshape, no transpose pass.
        io = io4.reshape(bs, self.na * S, self.no)

        if not return_p:
            return io
        # Training-style tensor p (bs, na, ny, nx, no): plain JAX, only on request
        # (extra full-input HBM pass; inference callers should keep return_p=False).
        p5 = p.reshape(bs, self.na, self.no, ny, nx).transpose(0, 1, 3, 4, 2)
        return io, p5


def _reference(p, img_size, anchors, nc):
    """Pure-JAX reference reproducing the PyTorch forward for validation."""
    na = anchors.shape[0]
    no = nc + 5
    bs, _, ny, nx = p.shape
    img_sz = max(img_size)
    stride = img_sz / max((nx, ny))
    yv, xv = jnp.meshgrid(jnp.arange(ny), jnp.arange(nx), indexing="ij")
    grid_xy = jnp.stack((xv, yv), -1).astype(jnp.float32).reshape(1, 1, ny, nx, 2)
    anchor_wh = (anchors / stride).reshape(1, na, 1, 1, 2)
    p5 = p.reshape(bs, na, no, ny, nx).transpose(0, 1, 3, 4, 2).astype(jnp.float32)
    xy = (jax.nn.sigmoid(p5[..., 0:2]) + grid_xy) * stride
    wh = (jnp.exp(p5[..., 2:4]) * anchor_wh) * stride
    rest = jax.nn.sigmoid(p5[..., 4:])
    io = jnp.concatenate([xy, wh, rest], axis=-1)
    return io.reshape(bs, -1, no), p5


if __name__ == "__main__":
    anchors = [(10.0, 13.0), (16.0, 30.0), (33.0, 23.0)]    # na = 3
    nc = 2                                                  # no = 7
    img_size = (64, 64)
    layer = YOLOLayerPallas(anchors, nc, img_size, yolo_index=0, layers=[-1])
    anchors_j = jnp.asarray(anchors, jnp.float32)
    ch = layer.na * layer.no                                # 21
    bs = 2

    # 1) f32, ny = nx = 16 (S = 256), also validating the training-style tensor.
    p1 = jax.random.normal(jax.random.PRNGKey(0), (bs, ch, 16, 16), jnp.float32)
    io1, p5 = layer(p1, img_size, return_p=True)
    io1 = jax.block_until_ready(io1)
    p5 = jax.block_until_ready(p5)
    io1_ref, p5_ref = _reference(p1, img_size, anchors_j, nc)
    np.testing.assert_allclose(np.asarray(io1), np.asarray(io1_ref), rtol=1e-5, atol=1e-5)
    np.testing.assert_allclose(np.asarray(p5), np.asarray(p5_ref), rtol=1e-6, atol=1e-6)
    assert io1.shape == (bs, layer.na * 16 * 16, layer.no)
    assert p5.shape == (bs, layer.na, 16, 16, layer.no)

    # 2) f32, ny = nx = 8 (S = 64: full-extent, non-128-aligned spatial block).
    p2 = jax.random.normal(jax.random.PRNGKey(1), (bs, ch, 8, 8), jnp.float32)
    io2 = jax.block_until_ready(layer(p2, img_size))
    io2_ref, _ = _reference(p2, img_size, anchors_j, nc)
    np.testing.assert_allclose(np.asarray(io2), np.asarray(io2_ref), rtol=1e-5, atol=1e-5)

    # 3) Multi-tile spatial path: tiny VMEM budget forces tile_s = 128, n_s = 8,
    #    spatial-major grid — exercises in-kernel grid offsets at s0 > 0.
    layer_mt = YOLOLayerPallas(anchors, nc, img_size, yolo_index=0, layers=[-1],
                               vmem_budget_bytes=64 * 1024)
    p3 = jax.random.normal(jax.random.PRNGKey(2), (bs, ch, 32, 32), jnp.float32)
    io3 = jax.block_until_ready(layer_mt(p3, img_size))
    io3_ref, _ = _reference(p3, img_size, anchors_j, nc)
    np.testing.assert_allclose(np.asarray(io3), np.asarray(io3_ref), rtol=1e-5, atol=1e-5)

    # 4) bf16 I/O (halved HBM traffic on v6e/v7x); math stays f32 in-register.
    #    NOTE: bf16 box coords lose ~0.4% relative precision; keep f32 I/O if
    #    the downstream NMS/IoU is sensitive.
    p4 = p1.astype(jnp.bfloat16)
    io4 = jax.block_until_ready(layer(p4, img_size))
    io4_ref, _ = _reference(p4.astype(jnp.float32), img_size, anchors_j, nc)
    np.testing.assert_allclose(np.asarray(io4, dtype=np.float32), np.asarray(io4_ref),
                               rtol=2e-2, atol=2e-2)

    print("KERNEL_OK")
</pallas_src>

<mosaic_0001>
module attributes {stable_mosaic.version = 11 : i64} {
  func.func @kernel(%arg0: i32, %arg1: i32, %arg2: memref<1x3x7x256xf32, #tpu.memory_space<vmem>>, %arg3: memref<1x3x256x7xf32, #tpu.memory_space<vmem>>) attributes {dimension_semantics = [#tpu.dimension_semantics<parallel>, #tpu.dimension_semantics<parallel>], iteration_bounds = array<i64: 2, 1>, scalar_prefetch = 0 : i64, scratch_operands = 0 : i64, tpu.core_type = #tpu.core_type<tc>, window_params = [{transform_indices = @transform_0, window_bounds = array<i64: 1, 3, 7, 256>}, {transform_indices = @transform_1, window_bounds = array<i64: 1, 3, 256, 7>}]} {
    %c256_i32 = arith.constant 256 : i32
    %0 = arith.muli %arg1, %c256_i32 : i32
    %1 = tpu.iota {dimensions = array<i32: 0>} : vector<7x256xi32>
    %2 = tpu.iota {dimensions = array<i32: 1>} : vector<7x256xi32>
    %3 = vector.broadcast %0 : i32 to vector<7x256xi32>
    %4 = arith.addi %3, %2 : vector<7x256xi32>
    %5 = arith.sitofp %4 : vector<7x256xi32> to vector<7x256xf32>
    %cst = arith.constant 1.600000e+01 : f32
    %6 = vector.broadcast %cst : f32 to vector<7x256xf32>
    %7 = arith.divf %5, %6 : vector<7x256xf32>
    %8 = math.floor %7 : vector<7x256xf32>
    %cst_0 = arith.constant 1.600000e+01 : f32
    %9 = vector.broadcast %cst_0 : f32 to vector<7x256xf32>
    %10 = arith.mulf %8, %9 : vector<7x256xf32>
    %11 = arith.subf %5, %10 : vector<7x256xf32>
    %c0_i32 = arith.constant 0 : i32
    %12 = vector.broadcast %c0_i32 : i32 to vector<7x256xi32>
    %13 = arith.cmpi eq, %1, %12 : vector<7x256xi32>
    %14 = arith.select %13, %11, %8 : vector<7x256xi1>, vector<7x256xf32>
    %cst_1 = arith.constant 4.000000e+00 : f32
    %15 = vector.broadcast %cst_1 : f32 to vector<7x256xf32>
    %16 = arith.mulf %14, %15 : vector<7x256xf32>
    %c2_i32 = arith.constant 2 : i32
    %17 = vector.broadcast %c2_i32 : i32 to vector<7x256xi32>
    %18 = arith.cmpi sge, %1, %17 : vector<7x256xi32>
    %c4_i32 = arith.constant 4 : i32
    %19 = vector.broadcast %c4_i32 : i32 to vector<7x256xi32>
    %20 = arith.cmpi slt, %1, %19 : vector<7x256xi32>
    %21 = arith.andi %18, %20 : vector<7x256xi1>
    %c2_i32_2 = arith.constant 2 : i32
    %22 = vector.broadcast %c2_i32_2 : i32 to vector<7x256xi32>
    %23 = arith.cmpi slt, %1, %22 : vector<7x256xi32>
    %c2_i32_3 = arith.constant 2 : i32
    %24 = vector.broadcast %c2_i32_3 : i32 to vector<7x256xi32>
    %25 = arith.cmpi eq, %1, %24 : vector<7x256xi32>
    %cst_4 = arith.constant 1.000000e+01 : f32
    %cst_5 = arith.constant 1.300000e+01 : f32
    %26 = vector.broadcast %cst_4 : f32 to vector<7x256xf32>
    %27 = vector.broadcast %cst_5 : f32 to vector<7x256xf32>
    %28 = arith.select %25, %26, %27 : vector<7x256xi1>, vector<7x256xf32>
    %c0 = arith.constant 0 : index
    %c0_6 = arith.constant 0 : index
    %c0_7 = arith.constant 0 : index
    %c0_8 = arith.constant 0 : index
    %29 = vector.load %arg2[%c0, %c0_6, %c0_7, %c0_8] : memref<1x3x7x256xf32, #tpu.memory_space<vmem>>, vector<1x1x7x256xf32>
    %30 = vector.shape_cast %29 : vector<1x1x7x256xf32> to vector<7x256xf32>
    %cst_9 = arith.constant 0.000000e+00 : f32
    %31 = vector.broadcast %cst_9 : f32 to vector<7x256xf32>
    %32 = arith.subf %31, %30 : vector<7x256xf32>
    %33 = arith.select %21, %30, %32 : vector<7x256xi1>, vector<7x256xf32>
    %34 = math.exp %33 : vector<7x256xf32>
    %35 = arith.mulf %34, %28 : vector<7x256xf32>
    %cst_10 = arith.constant 1.000000e+00 : f32
    %36 = vector.broadcast %cst_10 : f32 to vector<7x256xf32>
    %37 = arith.addf %36, %34 : vector<7x256xf32>
    %cst_11 = arith.constant 1.000000e+00 : f32
    %38 = vector.broadcast %cst_11 : f32 to vector<7x256xf32>
    %39 = arith.divf %38, %37 : vector<7x256xf32>
    %40 = arith.select %21, %35, %39 : vector<7x256xi1>, vector<7x256xf32>
    %cst_12 = arith.constant 4.000000e+00 : f32
    %41 = vector.broadcast %cst_12 : f32 to vector<7x256xf32>
    %42 = arith.mulf %40, %41 : vector<7x256xf32>
    %43 = arith.addf %42, %16 : vector<7x256xf32>
    %44 = arith.select %23, %43, %40 : vector<7x256xi1>, vector<7x256xf32>
    %cst_13 = arith.constant 0.000000e+00 : f32
    %45 = vector.broadcast %cst_13 : f32 to vector<1x256xf32>
    %46 = tpu.concatenate %44, %45 in 0 : vector<7x256xf32>, vector<1x256xf32> -> vector<8x256xf32>
    %47 = tpu.transpose %46, [1, 0] : vector<8x256xf32> -> vector<256x8xf32>
    %48 = vector.extract_strided_slice %47 {offsets = [0, 0], sizes = [256, 7], strides = [1, 1]} : vector<256x8xf32> to vector<256x7xf32>
    %c0_14 = arith.constant 0 : index
    %c0_15 = arith.constant 0 : index
    %c0_16 = arith.constant 0 : index
    %c0_17 = arith.constant 0 : index
    %49 = vector.load %arg3[%c0_14, %c0_15, %c0_16, %c0_17] : memref<1x3x256x7xf32, #tpu.memory_space<vmem>>, vector<1x1x256x7xf32>
    %50 = vector.shape_cast %49 : vector<1x1x256x7xf32> to vector<256x7xf32>
    %51 = vector.shape_cast %48 : vector<256x7xf32> to vector<1x1x256x7xf32>
    tpu.vector_store %arg3[%c0_14, %c0_15, %c0_16, %c0_17], %51 {strides = array<i32>} : memref<1x3x256x7xf32, #tpu.memory_space<vmem>>, vector<1x1x256x7xf32>,
    %c2_i32_18 = arith.constant 2 : i32
    %52 = vector.broadcast %c2_i32_18 : i32 to vector<7x256xi32>
    %53 = arith.cmpi eq, %1, %52 : vector<7x256xi32>
    %cst_19 = arith.constant 1.600000e+01 : f32
    %cst_20 = arith.constant 3.000000e+01 : f32
    %54 = vector.broadcast %cst_19 : f32 to vector<7x256xf32>
    %55 = vector.broadcast %cst_20 : f32 to vector<7x256xf32>
    %56 = arith.select %53, %54, %55 : vector<7x256xi1>, vector<7x256xf32>
    %c0_21 = arith.constant 0 : index
    %c1 = arith.constant 1 : index
    %c0_22 = arith.constant 0 : index
    %c0_23 = arith.constant 0 : index
    %57 = vector.load %arg2[%c0_21, %c1, %c0_22, %c0_23] : memref<1x3x7x256xf32, #tpu.memory_space<vmem>>, vector<1x1x7x256xf32>
    %58 = vector.shape_cast %57 : vector<1x1x7x256xf32> to vector<7x256xf32>
    %cst_24 = arith.constant 0.000000e+00 : f32
    %59 = vector.broadcast %cst_24 : f32 to vector<7x256xf32>
    %60 = arith.subf %59, %58 : vector<7x256xf32>
    %61 = arith.select %21, %58, %60 : vector<7x256xi1>, vector<7x256xf32>
    %62 = math.exp %61 : vector<7x256xf32>
    %63 = arith.mulf %62, %56 : vector<7x256xf32>
    %cst_25 = arith.constant 1.000000e+00 : f32
    %64 = vector.broadcast %cst_25 : f32 to vector<7x256xf32>
    %65 = arith.addf %64, %62 : vector<7x256xf32>
    %cst_26 = arith.constant 1.000000e+00 : f32
    %66 = vector.broadcast %cst_26 : f32 to vector<7x256xf32>
    %67 = arith.divf %66, %65 : vector<7x256xf32>
    %68 = arith.select %21, %63, %67 : vector<7x256xi1>, vector<7x256xf32>
    %cst_27 = arith.constant 4.000000e+00 : f32
    %69 = vector.broadcast %cst_27 : f32 to vector<7x256xf32>
    %70 = arith.mulf %68, %69 : vector<7x256xf32>
    %71 = arith.addf %70, %16 : vector<7x256xf32>
    %72 = arith.select %23, %71, %68 : vector<7x256xi1>, vector<7x256xf32>
    %cst_28 = arith.constant 0.000000e+00 : f32
    %73 = vector.broadcast %cst_28 : f32 to vector<1x256xf32>
    %74 = tpu.concatenate %72, %73 in 0 : vector<7x256xf32>, vector<1x256xf32> -> vector<8x256xf32>
    %75 = tpu.transpose %74, [1, 0] : vector<8x256xf32> -> vector<256x8xf32>
    %76 = vector.extract_strided_slice %75 {offsets = [0, 0], sizes = [256, 7], strides = [1, 1]} : vector<256x8xf32> to vector<256x7xf32>
    %c0_29 = arith.constant 0 : index
    %c1_30 = arith.constant 1 : index
    %c0_31 = arith.constant 0 : index
    %c0_32 = arith.constant 0 : index
    %77 = vector.load %arg3[%c0_29, %c1_30, %c0_31, %c0_32] : memref<1x3x256x7xf32, #tpu.memory_space<vmem>>, vector<1x1x256x7xf32>
    %78 = vector.shape_cast %77 : vector<1x1x256x7xf32> to vector<256x7xf32>
    %79 = vector.shape_cast %76 : vector<256x7xf32> to vector<1x1x256x7xf32>
    tpu.vector_store %arg3[%c0_29, %c1_30, %c0_31, %c0_32], %79 {strides = array<i32>} : memref<1x3x256x7xf32, #tpu.memory_space<vmem>>, vector<1x1x256x7xf32>,
    %c2_i32_33 = arith.constant 2 : i32
    %80 = vector.broadcast %c2_i32_33 : i32 to vector<7x256xi32>
    %81 = arith.cmpi eq, %1, %80 : vector<7x256xi32>
    %cst_34 = arith.constant 3.300000e+01 : f32
    %cst_35 = arith.constant 2.300000e+01 : f32
    %82 = vector.broadcast %cst_34 : f32 to vector<7x256xf32>
    %83 = vector.broadcast %cst_35 : f32 to vector<7x256xf32>
    %84 = arith.select %81, %82, %83 : vector<7x256xi1>, vector<7x256xf32>
    %c0_36 = arith.constant 0 : index
    %c2 = arith.constant 2 : index
    %c0_37 = arith.constant 0 : index
    %c0_38 = arith.constant 0 : index
    %85 = vector.load %arg2[%c0_36, %c2, %c0_37, %c0_38] : memref<1x3x7x256xf32, #tpu.memory_space<vmem>>, vector<1x1x7x256xf32>
    %86 = vector.shape_cast %85 : vector<1x1x7x256xf32> to vector<7x256xf32>
    %cst_39 = arith.constant 0.000000e+00 : f32
    %87 = vector.broadcast %cst_39 : f32 to vector<7x256xf32>
    %88 = arith.subf %87, %86 : vector<7x256xf32>
    %89 = arith.select %21, %86, %88 : vector<7x256xi1>, vector<7x256xf32>
    %90 = math.exp %89 : vector<7x256xf32>
    %91 = arith.mulf %90, %84 : vector<7x256xf32>
    %cst_40 = arith.constant 1.000000e+00 : f32
    %92 = vector.broadcast %cst_40 : f32 to vector<7x256xf32>
    %93 = arith.addf %92, %90 : vector<7x256xf32>
    %cst_41 = arith.constant 1.000000e+00 : f32
    %94 = vector.broadcast %cst_41 : f32 to vector<7x256xf32>
    %95 = arith.divf %94, %93 : vector<7x256xf32>
    %96 = arith.select %21, %91, %95 : vector<7x256xi1>, vector<7x256xf32>
    %cst_42 = arith.constant 4.000000e+00 : f32
    %97 = vector.broadcast %cst_42 : f32 to vector<7x256xf32>
    %98 = arith.mulf %96, %97 : vector<7x256xf32>
    %99 = arith.addf %98, %16 : vector<7x256xf32>
    %100 = arith.select %23, %99, %96 : vector<7x256xi1>, vector<7x256xf32>
    %cst_43 = arith.constant 0.000000e+00 : f32
    %101 = vector.broadcast %cst_43 : f32 to vector<1x256xf32>
    %102 = tpu.concatenate %100, %101 in 0 : vector<7x256xf32>, vector<1x256xf32> -> vector<8x256xf32>
    %103 = tpu.transpose %102, [1, 0] : vector<8x256xf32> -> vector<256x8xf32>
    %104 = vector.extract_strided_slice %103 {offsets = [0, 0], sizes = [256, 7], strides = [1, 1]} : vector<256x8xf32> to vector<256x7xf32>
    %c0_44 = arith.constant 0 : index
    %c2_45 = arith.constant 2 : index
    %c0_46 = arith.constant 0 : index
    %c0_47 = arith.constant 0 : index
    %105 = vector.load %arg3[%c0_44, %c2_45, %c0_46, %c0_47] : memref<1x3x256x7xf32, #tpu.memory_space<vmem>>, vector<1x1x256x7xf32>
    %106 = vector.shape_cast %105 : vector<1x1x256x7xf32> to vector<256x7xf32>
    %107 = vector.shape_cast %104 : vector<256x7xf32> to vector<1x1x256x7xf32>
    tpu.vector_store %arg3[%c0_44, %c2_45, %c0_46, %c0_47], %107 {strides = array<i32>} : memref<1x3x256x7xf32, #tpu.memory_space<vmem>>, vector<1x1x256x7xf32>,
    return
  }
  func.func @transform_0(%arg0: i32, %arg1: i32) -> (i32, i32, i32, i32) {
    %c0_i32 = arith.constant 0 : i32
    %c0_i32_0 = arith.constant 0 : i32
    %c0_i32_1 = arith.constant 0 : i32
    return %arg0, %c0_i32, %c0_i32_0, %arg1 : i32, i32, i32, i32
  }
  func.func @transform_1(%arg0: i32, %arg1: i32) -> (i32, i32, i32, i32) {
    %c0_i32 = arith.constant 0 : i32
    %c0_i32_0 = arith.constant 0 : i32
    %c0_i32_1 = arith.constant 0 : i32
    return %arg0, %c0_i32, %arg1, %c0_i32_0 : i32, i32, i32, i32
  }
}

</mosaic_0001>

<llo_original>
// kernel: tpu_custom_call.1
$region0: #{tpu_custom_call.1}
  #allocation0 [shape = 'u32[]', space=smem, size = 0x4, offset = 0x4, fixed_abs, tag = 'smem constant byte address 0x4 - core index']
  #allocation1 [shape = 'u32[144,128]{1,0:T(1,128)}', space=vmem, size = 0x12000, scoped, tag = 'internal scratch']
  %s0 = inlined_call_operand.vmem [shape: f32[2,3,7,256], index: 0, kind: input, shape index: {}]
  %s1 = inlined_call_operand.vmem [shape: f32[2,3,256,7], index: 1, kind: output, shape index: {}]
  %s2 = sld [smem:[#allocation0]]
  $region37: #{tpu_custom_call.1} parent=0
    _
  %s4 = ssub.s32 1, %s2
  %s5 = scalar_select 0, %s4, %s2
  loop: start=0, step=1, limit=4
  $region2: #{tpu_custom_call.1} parent=0 // loop_pre_header
    _
  $region3: #{tpu_custom_call.1} parent=0 // loop_header
    %s7 = sphi 0, %s11
    %p8 = scmp.ge.s32.totalorder %s7, 4
    %s14 = sphi 0, %s26
    %s15 = sphi 0, %s22
    %s16 = sphi 0, %s14
    %s17 = sphi 0, %s15
    %s18 = sphi 0, %s16
    %s19 = sphi 0, %s17
    %s31 = sphi 0, %s33
    %s34 = sphi 0, %s31
    %s35 = sphi 0, %s34
    %s51 = sphi 0, %s35
    %s59 = sphi 0, %s61
    %s62 = sphi 0, %s59
    %s63 = sphi 0, %s62
    %s79 = sphi 0, %s63
  $region4: #{tpu_custom_call.1} parent=0 // loop_header_branch
    %10 = sbr.rel (%p8) target = $region8
  $region5: #{tpu_custom_call.1} parent=0 // loop_body
    %s12 = ssub.s32 %s7, 1
    %s13 = ssub.s32 %s7, 2
    %s20 = sadd.s32 1, %s15
    %p21 = scmp.ge.s32.totalorder %s20, 1
    %s22 = scalar_select %p21, 0, %s20
    %s23 = sadd.s32 1, %s14
    %s24 = scalar_select %p21, %s23, %s14
    %p25 = scmp.ge.s32.totalorder %s24, 2
    %s26 = scalar_select %p25, 0, %s24
    %s27 = ssub.s32 %s14, %s26
    %s28 = ssub.s32 %s15, %s22
    %s29 = sor.u32 %s27, %s28
    %p30 = scmp.eq.s32.totalorder %s29, 0
    %s32 = sadd.s32 %s31, 1
    %s33 = scalar_select %p30, %s31, %s32
    %p36 = pneg %p30
    %p37 = scmp.eq.s32.totalorder %s7, 1
    %p38 = por %p36, %p37
    %p39 = scmp.ne.s32.totalorder %s31, %s34
    %p40 = scmp.eq.s32.totalorder %s7, 0
    %p41 = por %p39, %p40
    %p42 = scmp.ne.s32.totalorder %s31, %s34
    %p43 = scmp.eq.s32.totalorder %s12, 1
    %p44 = por %p42, %p43
    %p45 = scmp.ne.s32.totalorder %s34, %s35
    %p46 = scmp.eq.s32.totalorder %s12, 0
    %p47 = por %p45, %p46
    %p48 = scmp.ne.s32.totalorder %s34, %s35
    %p49 = scmp.eq.s32.totalorder %s13, 1
    %p50 = por %p48, %p49
    %p52 = scmp.ne.s32.totalorder %s35, %s51
    %p53 = scmp.eq.s32.totalorder %s13, 0
    %p54 = por %p52, %p53
    %s55 = ssub.s32 %s14, %s26
    %s56 = ssub.s32 %s15, %s22
    %s57 = sor.u32 %s55, %s56
    %p58 = scmp.eq.s32.totalorder %s57, 0
    %s60 = sadd.s32 %s59, 1
    %s61 = scalar_select %p58, %s59, %s60
    %p64 = pneg %p58
    %p65 = scmp.eq.s32.totalorder %s7, 1
    %p66 = por %p64, %p65
    %p67 = scmp.ne.s32.totalorder %s59, %s62
    %p68 = scmp.eq.s32.totalorder %s7, 0
    %p69 = por %p67, %p68
    %p70 = scmp.ne.s32.totalorder %s59, %s62
    %p71 = scmp.eq.s32.totalorder %s12, 1
    %p72 = por %p70, %p71
    %p73 = scmp.ne.s32.totalorder %s62, %s63
    %p74 = scmp.eq.s32.totalorder %s12, 0
    %p75 = por %p73, %p74
    %p76 = scmp.ne.s32.totalorder %s62, %s63
    %p77 = scmp.eq.s32.totalorder %s13, 1
    %p78 = por %p76, %p77
    %p80 = scmp.ne.s32.totalorder %s63, %s79
    %p81 = scmp.eq.s32.totalorder %s13, 0
    %p82 = por %p80, %p81
    %p83 = scmp.le.s32.totalorder 1, %s7
    %p84 = scmp.lt.s32.totalorder %s7, 3
    %p85 = pnand %p83, %p84
    %p86 = pneg %p85
    // Predicated region
    $region9: #{tpu_custom_call.1} parent=5 // pred_check
      _
    $region10: #{tpu_custom_call.1} parent=5 // pred_check_branch
      %88 = sbr.rel (%p85) target = $region12
    $region11: #{tpu_custom_call.1} parent=5 // pred_region
      %s89 = ssub.s32 %s7, 1
    $region12: #{tpu_custom_call.1} parent=5 // pred_fallthru
      _
    %p90 = scmp.lt.s32.totalorder %s7, 2
    // Predicated region
    $region13: #{tpu_custom_call.1} parent=5 // pred_check
      %p91 = pneg %p90
    $region14: #{tpu_custom_call.1} parent=5 // pred_check_branch
      %93 = sbr.rel (%p91) target = $region16
    $region15: #{tpu_custom_call.1} parent=5 // pred_region
      // Predicated region
      $region17: #{tpu_custom_call.1} parent=15 // pred_check
        %p94 = pneg %p41
      $region18: #{tpu_custom_call.1} parent=15 // pred_check_branch
        %96 = sbr.rel (%p94) target = $region20
      $region19: #{tpu_custom_call.1} parent=15 // pred_region
        %s97 = smul.u32 2, %s15
        %p98 = scmp.lt.s32.totalorder %s14, 1
        %s99 = scalar_select %p98, %s14, 1
        %p100 = scmp.lt.s32.totalorder %s97, 1
        %s101 = scalar_select %p100, %s97, 1
        %s102 = smul.addr %s99, 6
        %s103 = sadd.s32 %s101, %s102
        %s104 = smul.addr %s103, 8
        %s105 = scalar_lea.vmem %s0, %s104
        %s106 = smul.u32 2, %s15
      $region20: #{tpu_custom_call.1} parent=15 // pred_fallthru
        _
    $region16: #{tpu_custom_call.1} parent=5 // pred_fallthru
      _
    %p107 = scmp.le.s32.totalorder 1, %s7
    %p108 = scmp.lt.s32.totalorder %s7, 3
    %p109 = pnand %p107, %p108
    %p110 = pneg %p109
    // Predicated region
    $region21: #{tpu_custom_call.1} parent=5 // pred_check
      _
    $region22: #{tpu_custom_call.1} parent=5 // pred_check_branch
      %112 = sbr.rel (%p109) target = $region24
    $region23: #{tpu_custom_call.1} parent=5 // pred_region
      %s113 = ssub.s32 %s7, 1
      %s114 = smul.u32 2, %s17
      %p115 = scmp.lt.s32.totalorder %s16, 1
      %s116 = scalar_select %p115, %s16, 1
      %p117 = scmp.lt.s32.totalorder %s114, 1
      %s118 = scalar_select %p117, %s114, 1
      %s119 = smul.addr %s116, 6
      %s120 = sadd.s32 %s118, %s119
      %s121 = smul.addr %s120, 8
      %s122 = scalar_lea.vmem %s0, %s121
      %p123 = pneg %p47
      %p124 = pneg %p44
      %p125 = pneg %p75
      %p126 = pneg %p72
      %s127 = smul.u32 32, %s17
      %p128 = scmp.lt.s32.totalorder %s16, 1
      %s129 = scalar_select %p128, %s16, 1
      %p130 = scmp.lt.s32.totalorder %s127, 31
      %s131 = scalar_select %p130, %s127, 31
      %s132 = smul.addr %s129, 96
      %s133 = sadd.s32 %s131, %s132
      %s134 = smul.addr %s133, 8
      %s135 = scalar_lea.vmem %s1, %s134
      %s136 = smul.u32 2, %s17
      %p137 = scmp.lt.s32.totalorder %s16, 1
      %s138 = scalar_select %p137, %s16, 1
      %p139 = scmp.lt.s32.totalorder %s136, 1
      %s140 = scalar_select %p139, %s136, 1
      %s141 = smul.addr %s138, 6
      %s142 = sadd.s32 %s140, %s141
      %s143 = smul.addr %s142, 8
      %s144 = scalar_lea.vmem %s0, %s143
      %s145 = smul.u32 2, %s17
      %s146 = smul.u32 32, %s17
      %p147 = scmp.lt.s32.totalorder %s16, 1
      %s148 = scalar_select %p147, %s16, 1
      %p149 = scmp.lt.s32.totalorder %s146, 31
      %s150 = scalar_select %p149, %s146, 31
      %s151 = smul.addr %s148, 96
      %s152 = sadd.s32 %s150, %s151
      %s153 = smul.addr %s152, 8
      %s154 = scalar_lea.vmem %s1, %s153
      %s155 = smul.u32 32, %s17
      %s156 = smul.u32 %s17, 256
      %v157 = vlaneseq
      %v158 = vshrl.u32 %v157, 7
      %v159 = vlaneseq
      %v160 = vand.u32 %v159, 127
      %v161 = vadd.s32 %v160, 128
      %v162 = vstv %s156
      %v163 = vadd.s32 %v162, %v160
      %v164 = vadd.s32 %v162, %v161
      %v165 = vcvt.s32.f32 %v163
      %v166 = vcvt.s32.f32 %v164
      %v167 = vrcp.pop 16.0
      %v168 = vmul.f32 %v165, %v167
      %v169 = vmul.f32 %v166, %v167
      %v170 = vfloor.f32 %v168
      %v171 = vfloor.f32 %v169
      %v172 = vmul.f32 %v170, 16.0
      %v173 = vmul.f32 %v171, 16.0
      %v174 = vsub.f32 %v165, %v172
      %v175 = vsub.f32 %v166, %v173
      %vm176 = vcmp.eq.s32.totalorder %v158, 0
      %v177 = vsel %vm176, %v174, %v170
      %v178 = vsel %vm176, %v175, %v171
      %v179 = vmul.f32 %v177, 4.0
      %v180 = vmul.f32 %v178, 4.0
      %vm181 = vcmp.ge.s32.totalorder %v158, 2
      %vm182 = vcmp.lt.s32.totalorder %v158, 4
      %vm183 = vmand %vm181, %vm182
      %vm184 = vcmp.lt.s32.totalorder %v158, 2
      %vm185 = vcmp.eq.s32.totalorder %v158, 2
      %v186 = vsel %vm185, 10.0, 13.0
      %v187 = vld [vmem:[%s144] sm:$0x7f]
      %v188 = vld [vmem:[%s144 + $0x8] sm:$0x7f]
      %v189 = vsub.f32 0.0, %v187
      %v190 = vsub.f32 0.0, %v188
      %v191 = vsel %vm183, %v187, %v189
      %v192 = vsel %vm183, %v188, %v190
      %v193 = vmul.f32 %v191, 1.442695
      %v194 = vpow.pop %v193
      %v195 = vmul.f32 %v192, 1.442695
      %v196 = vpow.pop %v195
      %v197 = vmul.f32 %v194, %v186
      %v198 = vmul.f32 %v196, %v186
      %v199 = vadd.f32 %v194, 1.0
      %v200 = vadd.f32 %v196, 1.0
      %v201 = vrcp.pop %v199
      %v202 = vmul.f32 1.0, %v201
      %v203 = vrcp.pop %v200
      %v204 = vmul.f32 1.0, %v203
      %v205 = vsel %vm183, %v197, %v202
      %v206 = vsel %vm183, %v198, %v204
      %v207 = vmul.f32 %v205, 4.0
      %v208 = vmul.f32 %v206, 4.0
      %v209 = vadd.f32 %v207, %v179
      %v210 = vadd.f32 %v208, %v180
      %v211 = vsel %vm184, %v209, %v205
      %v212 = vsel %vm184, %v210, %v206
      %vm213 = vcmask 1046528
      %v214 = vsel %vm213, %v211, 0.0
      %v215 = vsel %vm213, %v212, 0.0
      %216 = vxpose.xlu0.b32.start [1/16] %v214, 128
      %217 = vxpose.xlu0.b32.cont [2/16] 0.0, 128
      %218 = vxpose.xlu0.b32.cont [3/16] 0.0, 128
      %219 = vxpose.xlu0.b32.cont [4/16] 0.0, 128
      %220 = vxpose.xlu0.b32.cont [5/16] 0.0, 128
      %221 = vxpose.xlu0.b32.cont [6/16] 0.0, 128
      %222 = vxpose.xlu0.b32.cont [7/16] 0.0, 128
      %223 = vxpose.xlu0.b32.cont [8/16] 0.0, 128
      %224 = vxpose.xlu0.b32.cont [9/16] 0.0, 128
      %225 = vxpose.xlu0.b32.cont [10/16] 0.0, 128
      %226 = vxpose.xlu0.b32.cont [11/16] 0.0, 128
      %227 = vxpose.xlu0.b32.cont [12/16] 0.0, 128
      %228 = vxpose.xlu0.b32.cont [13/16] 0.0, 128
      %229 = vxpose.xlu0.b32.cont [14/16] 0.0, 128
      %230 = vxpose.xlu0.b32.cont [15/16] 0.0, 128
      %231 = vxpose.xlu0.b32.end [16/16] 0.0, 128
      %v232 = vpop.trf.xlu0
      %v233 = vpop.trf.xlu0
      %v234 = vpop.trf.xlu0
      %v235 = vpop.trf.xlu0
      %v236 = vpop.trf.xlu0
      %v237 = vpop.trf.xlu0
      %v238 = vpop.trf.xlu0
      %v239 = vpop.trf.xlu0
      %v240 = vpop.trf.xlu0
      %v241 = vpop.trf.xlu0
      %v242 = vpop.trf.xlu0
      %v243 = vpop.trf.xlu0
      %v244 = vpop.trf.xlu0
      %v245 = vpop.trf.xlu0
      %v246 = vpop.trf.xlu0
      %v247 = vpop.trf.xlu0
      %248 = vxpose.xlu0.b32.start [1/16] %v215, 128
      %249 = vxpose.xlu0.b32.cont [2/16] 0.0, 128
      %250 = vxpose.xlu0.b32.cont [3/16] 0.0, 128
      %251 = vxpose.xlu0.b32.cont [4/16] 0.0, 128
      %252 = vxpose.xlu0.b32.cont [5/16] 0.0, 128
      %253 = vxpose.xlu0.b32.cont [6/16] 0.0, 128
      %254 = vxpose.xlu0.b32.cont [7/16] 0.0, 128
      %255 = vxpose.xlu0.b32.cont [8/16] 0.0, 128
      %256 = vxpose.xlu0.b32.cont [9/16] 0.0, 128
      %257 = vxpose.xlu0.b32.cont [10/16] 0.0, 128
      %258 = vxpose.xlu0.b32.cont [11/16] 0.0, 128
      %259 = vxpose.xlu0.b32.cont [12/16] 0.0, 128
      %260 = vxpose.xlu0.b32.cont [13/16] 0.0, 128
      %261 = vxpose.xlu0.b32.cont [14/16] 0.0, 128
      %262 = vxpose.xlu0.b32.cont [15/16] 0.0, 128
      %263 = vxpose.xlu0.b32.end [16/16] 0.0, 128
      %v264 = vpop.trf.xlu0
      %v265 = vpop.trf.xlu0
      %v266 = vpop.trf.xlu0
      %v267 = vpop.trf.xlu0
      %v268 = vpop.trf.xlu0
      %v269 = vpop.trf.xlu0
      %v270 = vpop.trf.xlu0
      %v271 = vpop.trf.xlu0
      %v272 = vpop.trf.xlu0
      %v273 = vpop.trf.xlu0
      %v274 = vpop.trf.xlu0
      %v275 = vpop.trf.xlu0
      %v276 = vpop.trf.xlu0
      %v277 = vpop.trf.xlu0
      %v278 = vpop.trf.xlu0
      %v279 = vpop.trf.xlu0
      %vm280 = vcmask 56320
      %281 = vst.msk [vmem:[%s154] sm:$0xff] %vm280, %v232
      %282 = vst.msk [vmem:[%s154 + $0x8] sm:$0xff] %vm280, %v233
      %283 = vst.msk [vmem:[%s154 + $0x10] sm:$0xff] %vm280, %v234
      %284 = vst.msk [vmem:[%s154 + $0x18] sm:$0xff] %vm280, %v235
      %285 = vst.msk [vmem:[%s154 + $0x20] sm:$0xff] %vm280, %v236
      %286 = vst.msk [vmem:[%s154 + $0x28] sm:$0xff] %vm280, %v237
      %287 = vst.msk [vmem:[%s154 + $0x30] sm:$0xff] %vm280, %v238
      %288 = vst.msk [vmem:[%s154 + $0x38] sm:$0xff] %vm280, %v239
      %289 = vst.msk [vmem:[%s154 + $0x40] sm:$0xff] %vm280, %v240
      %290 = vst.msk [vmem:[%s154 + $0x48] sm:$0xff] %vm280, %v241
      %291 = vst.msk [vmem:[%s154 + $0x50] sm:$0xff] %vm280, %v242
      %292 = vst.msk [vmem:[%s154 + $0x58] sm:$0xff] %vm280, %v243
      %293 = vst.msk [vmem:[%s154 + $0x60] sm:$0xff] %vm280, %v244
      %294 = vst.msk [vmem:[%s154 + $0x68] sm:$0xff] %vm280, %v245
      %295 = vst.msk [vmem:[%s154 + $0x70] sm:$0xff] %vm280, %v246
      %296 = vst.msk [vmem:[%s154 + $0x78] sm:$0xff] %vm280, %v247
      %297 = vst.msk [vmem:[%s154 + $0x80] sm:$0xff] %vm280, %v264
      %298 = vst.msk [vmem:[%s154 + $0x88] sm:$0xff] %vm280, %v265
      %299 = vst.msk [vmem:[%s154 + $0x90] sm:$0xff] %vm280, %v266
      %300 = vst.msk [vmem:[%s154 + $0x98] sm:$0xff] %vm280, %v267
      %301 = vst.msk [vmem:[%s154 + $0xa0] sm:$0xff] %vm280, %v268
      %302 = vst.msk [vmem:[%s154 + $0xa8] sm:$0xff] %vm280, %v269
      %303 = vst.msk [vmem:[%s154 + $0xb0] sm:$0xff] %vm280, %v270
      %304 = vst.msk [vmem:[%s154 + $0xb8] sm:$0xff] %vm280, %v271
      %305 = vst.msk [vmem:[%s154 + $0xc0] sm:$0xff] %vm280, %v272
      %306 = vst.msk [vmem:[%s154 + $0xc8] sm:$0xff] %vm280, %v273
      %307 = vst.msk [vmem:[%s154 + $0xd0] sm:$0xff] %vm280, %v274
      %308 = vst.msk [vmem:[%s154 + $0xd8] sm:$0xff] %vm280, %v275
      %309 = vst.msk [vmem:[%s154 + $0xe0] sm:$0xff] %vm280, %v276
      %310 = vst.msk [vmem:[%s154 + $0xe8] sm:$0xff] %vm280, %v277
      %311 = vst.msk [vmem:[%s154 + $0xf0] sm:$0xff] %vm280, %v278
      %312 = vst.msk [vmem:[%s154 + $0xf8] sm:$0xff] %vm280, %v279
      %v313 = vsel %vm185, 16.0, 30.0
      %s314 = scalar_lea.vmem %s144, 16
      %v315 = vld [vmem:[%s314] sm:$0x7f]
      %v316 = vld [vmem:[%s314 + $0x8] sm:$0x7f]
      %v317 = vsub.f32 0.0, %v315
      %v318 = vsub.f32 0.0, %v316
      %v319 = vsel %vm183, %v315, %v317
      %v320 = vsel %vm183, %v316, %v318
      %v321 = vmul.f32 %v319, 1.442695
      %v322 = vpow.pop %v321
      %v323 = vmul.f32 %v320, 1.442695
      %v324 = vpow.pop %v323
      %v325 = vmul.f32 %v322, %v313
      %v326 = vmul.f32 %v324, %v313
      %v327 = vadd.f32 %v322, 1.0
      %v328 = vadd.f32 %v324, 1.0
      %v329 = vrcp.pop %v327
      %v330 = vmul.f32 1.0, %v329
      %v331 = vrcp.pop %v328
      %v332 = vmul.f32 1.0, %v331
      %v333 = vsel %vm183, %v325, %v330
      %v334 = vsel %vm183, %v326, %v332
      %v335 = vmul.f32 %v333, 4.0
      %v336 = vmul.f32 %v334, 4.0
      %v337 = vadd.f32 %v335, %v179
      %v338 = vadd.f32 %v336, %v180
      %v339 = vsel %vm184, %v337, %v333
      %v340 = vsel %vm184, %v338, %v334
      %v341 = vsel %vm213, %v339, 0.0
      %v342 = vsel %vm213, %v340, 0.0
      %343 = vxpose.xlu0.b32.start [1/16] %v341, 128
      %344 = vxpose.xlu0.b32.cont [2/16] 0.0, 128
      %345 = vxpose.xlu0.b32.cont [3/16] 0.0, 128
      %346 = vxpose.xlu0.b32.cont [4/16] 0.0, 128
      %347 = vxpose.xlu0.b32.cont [5/16] 0.0, 128
      %348 = vxpose.xlu0.b32.cont [6/16] 0.0, 128
      %349 = vxpose.xlu0.b32.cont [7/16] 0.0, 128
      %350 = vxpose.xlu0.b32.cont [8/16] 0.0, 128
      %351 = vxpose.xlu0.b32.cont [9/16] 0.0, 128
      %352 = vxpose.xlu0.b32.cont [10/16] 0.0, 128
      %353 = vxpose.xlu0.b32.cont [11/16] 0.0, 128
      %354 = vxpose.xlu0.b32.cont [12/16] 0.0, 128
      %355 = vxpose.xlu0.b32.cont [13/16] 0.0, 128
      %356 = vxpose.xlu0.b32.cont [14/16] 0.0, 128
      %357 = vxpose.xlu0.b32.cont [15/16] 0.0, 128
      %358 = vxpose.xlu0.b32.end [16/16] 0.0, 128
      %v359 = vpop.trf.xlu0
      %v360 = vpop.trf.xlu0
      %v361 = vpop.trf.xlu0
      %v362 = vpop.trf.xlu0
      %v363 = vpop.trf.xlu0
      %v364 = vpop.trf.xlu0
      %v365 = vpop.trf.xlu0
      %v366 = vpop.trf.xlu0
      %v367 = vpop.trf.xlu0
      %v368 = vpop.trf.xlu0
      %v369 = vpop.trf.xlu0
      %v370 = vpop.trf.xlu0
      %v371 = vpop.trf.xlu0
      %v372 = vpop.trf.xlu0
      %v373 = vpop.trf.xlu0
      %v374 = vpop.trf.xlu0
      %375 = vxpose.xlu0.b32.start [1/16] %v342, 128
      %376 = vxpose.xlu0.b32.cont [2/16] 0.0, 128
      %377 = vxpose.xlu0.b32.cont [3/16] 0.0, 128
      %378 = vxpose.xlu0.b32.cont [4/16] 0.0, 128
      %379 = vxpose.xlu0.b32.cont [5/16] 0.0, 128
      %380 = vxpose.xlu0.b32.cont [6/16] 0.0, 128
      %381 = vxpose.xlu0.b32.cont [7/16] 0.0, 128
      %382 = vxpose.xlu0.b32.cont [8/16] 0.0, 128
      %383 = vxpose.xlu0.b32.cont [9/16] 0.0, 128
      %384 = vxpose.xlu0.b32.cont [10/16] 0.0, 128
      %385 = vxpose.xlu0.b32.cont [11/16] 0.0, 128
      %386 = vxpose.xlu0.b32.cont [12/16] 0.0, 128
      %387 = vxpose.xlu0.b32.cont [13/16] 0.0, 128
      %388 = vxpose.xlu0.b32.cont [14/16] 0.0, 128
      %389 = vxpose.xlu0.b32.cont [15/16] 0.0, 128
      %390 = vxpose.xlu0.b32.end [16/16] 0.0, 128
      %v391 = vpop.trf.xlu0
      %v392 = vpop.trf.xlu0
      %v393 = vpop.trf.xlu0
      %v394 = vpop.trf.xlu0
      %v395 = vpop.trf.xlu0
      %v396 = vpop.trf.xlu0
      %v397 = vpop.trf.xlu0
      %v398 = vpop.trf.xlu0
      %v399 = vpop.trf.xlu0
      %v400 = vpop.trf.xlu0
      %v401 = vpop.trf.xlu0
      %v402 = vpop.trf.xlu0
      %v403 = vpop.trf.xlu0
      %v404 = vpop.trf.xlu0
      %v405 = vpop.trf.xlu0
      %v406 = vpop.trf.xlu0
      %s407 = scalar_lea.vmem %s154, 256
      %408 = vst.msk [vmem:[%s407] sm:$0xff] %vm280, %v359
      %409 = vst.msk [vmem:[%s407 + $0x8] sm:$0xff] %vm280, %v360
      %410 = vst.msk [vmem:[%s407 + $0x10] sm:$0xff] %vm280, %v361
      %411 = vst.msk [vmem:[%s407 + $0x18] sm:$0xff] %vm280, %v362
      %412 = vst.msk [vmem:[%s407 + $0x20] sm:$0xff] %vm280, %v363
      %413 = vst.msk [vmem:[%s407 + $0x28] sm:$0xff] %vm280, %v364
      %414 = vst.msk [vmem:[%s407 + $0x30] sm:$0xff] %vm280, %v365
      %415 = vst.msk [vmem:[%s407 + $0x38] sm:$0xff] %vm280, %v366
      %416 = vst.msk [vmem:[%s407 + $0x40] sm:$0xff] %vm280, %v367
      %417 = vst.msk [vmem:[%s407 + $0x48] sm:$0xff] %vm280, %v368
      %418 = vst.msk [vmem:[%s407 + $0x50] sm:$0xff] %vm280, %v369
      %419 = vst.msk [vmem:[%s407 + $0x58] sm:$0xff] %vm280, %v370
      %420 = vst.msk [vmem:[%s407 + $0x60] sm:$0xff] %vm280, %v371
      %421 = vst.msk [vmem:[%s407 + $0x68] sm:$0xff] %vm280, %v372
      %422 = vst.msk [vmem:[%s407 + $0x70] sm:$0xff] %vm280, %v373
      %423 = vst.msk [vmem:[%s407 + $0x78] sm:$0xff] %vm280, %v374
      %424 = vst.msk [vmem:[%s407 + $0x80] sm:$0xff] %vm280, %v391
      %425 = vst.msk [vmem:[%s407 + $0x88] sm:$0xff] %vm280, %v392
      %426 = vst.msk [vmem:[%s407 + $0x90] sm:$0xff] %vm280, %v393
      %427 = vst.msk [vmem:[%s407 + $0x98] sm:$0xff] %vm280, %v394
      %428 = vst.msk [vmem:[%s407 + $0xa0] sm:$0xff] %vm280, %v395
      %429 = vst.msk [vmem:[%s407 + $0xa8] sm:$0xff] %vm280, %v396
      %430 = vst.msk [vmem:[%s407 + $0xb0] sm:$0xff] %vm280, %v397
      %431 = vst.msk [vmem:[%s407 + $0xb8] sm:$0xff] %vm280, %v398
      %432 = vst.msk [vmem:[%s407 + $0xc0] sm:$0xff] %vm280, %v399
      %433 = vst.msk [vmem:[%s407 + $0xc8] sm:$0xff] %vm280, %v400
      %434 = vst.msk [vmem:[%s407 + $0xd0] sm:$0xff] %vm280, %v401
      %435 = vst.msk [vmem:[%s407 + $0xd8] sm:$0xff] %vm280, %v402
      %436 = vst.msk [vmem:[%s407 + $0xe0] sm:$0xff] %vm280, %v403
      %437 = vst.msk [vmem:[%s407 + $0xe8] sm:$0xff] %vm280, %v404
      %438 = vst.msk [vmem:[%s407 + $0xf0] sm:$0xff] %vm280, %v405
      %439 = vst.msk [vmem:[%s407 + $0xf8] sm:$0xff] %vm280, %v406
      %v440 = vsel %vm185, 33.0, 23.0
      %s441 = scalar_lea.vmem %s144, 32
      %v442 = vld [vmem:[%s441] sm:$0x7f]
      %v443 = vld [vmem:[%s441 + $0x8] sm:$0x7f]
      %v444 = vsub.f32 0.0, %v442
      %v445 = vsub.f32 0.0, %v443
      %v446 = vsel %vm183, %v442, %v444
      %v447 = vsel %vm183, %v443, %v445
      %v448 = vmul.f32 %v446, 1.442695
      %v449 = vpow.pop %v448
      %v450 = vmul.f32 %v447, 1.442695
      %v451 = vpow.pop %v450
      %v452 = vmul.f32 %v449, %v440
      %v453 = vmul.f32 %v451, %v440
      %v454 = vadd.f32 %v449, 1.0
      %v455 = vadd.f32 %v451, 1.0
      %v456 = vrcp.pop %v454
      %v457 = vmul.f32 1.0, %v456
      %v458 = vrcp.pop %v455
      %v459 = vmul.f32 1.0, %v458
      %v460 = vsel %vm183, %v452, %v457
      %v461 = vsel %vm183, %v453, %v459
      %v462 = vmul.f32 %v460, 4.0
      %v463 = vmul.f32 %v461, 4.0
      %v464 = vadd.f32 %v462, %v179
      %v465 = vadd.f32 %v463, %v180
      %v466 = vsel %vm184, %v464, %v460
      %v467 = vsel %vm184, %v465, %v461
      %v468 = vsel %vm213, %v466, 0.0
      %v469 = vsel %vm213, %v467, 0.0
      %470 = vxpose.xlu0.b32.start [1/16] %v468, 128
      %471 = vxpose.xlu0.b32.cont [2/16] 0.0, 128
      %472 = vxpose.xlu0.b32.cont [3/16] 0.0, 128
      %473 = vxpose.xlu0.b32.cont [4/16] 0.0, 128
      %474 = vxpose.xlu0.b32.cont [5/16] 0.0, 128
      %475 = vxpose.xlu0.b32.cont [6/16] 0.0, 128
      %476 = vxpose.xlu0.b32.cont [7/16] 0.0, 128
      %477 = vxpose.xlu0.b32.cont [8/16] 0.0, 128
      %478 = vxpose.xlu0.b32.cont [9/16] 0.0, 128
      %479 = vxpose.xlu0.b32.cont [10/16] 0.0, 128
      %480 = vxpose.xlu0.b32.cont [11/16] 0.0, 128
      %481 = vxpose.xlu0.b32.cont [12/16] 0.0, 128
      %482 = vxpose.xlu0.b32.cont [13/16] 0.0, 128
      %483 = vxpose.xlu0.b32.cont [14/16] 0.0, 128
      %484 = vxpose.xlu0.b32.cont [15/16] 0.0, 128
      %485 = vxpose.xlu0.b32.end [16/16] 0.0, 128
      %v486 = vpop.trf.xlu0
      %v487 = vpop.trf.xlu0
      %v488 = vpop.trf.xlu0
      %v489 = vpop.trf.xlu0
      %v490 = vpop.trf.xlu0
      %v491 = vpop.trf.xlu0
      %v492 = vpop.trf.xlu0
      %v493 = vpop.trf.xlu0
      %v494 = vpop.trf.xlu0
      %v495 = vpop.trf.xlu0
      %v496 = vpop.trf.xlu0
      %v497 = vpop.trf.xlu0
      %v498 = vpop.trf.xlu0
      %v499 = vpop.trf.xlu0
      %v500 = vpop.trf.xlu0
      %v501 = vpop.trf.xlu0
      %502 = vxpose.xlu0.b32.start [1/16] %v469, 128
      %503 = vxpose.xlu0.b32.cont [2/16] 0.0, 128
      %504 = vxpose.xlu0.b32.cont [3/16] 0.0, 128
      %505 = vxpose.xlu0.b32.cont [4/16] 0.0, 128
      %506 = vxpose.xlu0.b32.cont [5/16] 0.0, 128
      %507 = vxpose.xlu0.b32.cont [6/16] 0.0, 128
      %508 = vxpose.xlu0.b32.cont [7/16] 0.0, 128
      %509 = vxpose.xlu0.b32.cont [8/16] 0.0, 128
      %510 = vxpose.xlu0.b32.cont [9/16] 0.0, 128
      %511 = vxpose.xlu0.b32.cont [10/16] 0.0, 128
      %512 = vxpose.xlu0.b32.cont [11/16] 0.0, 128
      %513 = vxpose.xlu0.b32.cont [12/16] 0.0, 128
      %514 = vxpose.xlu0.b32.cont [13/16] 0.0, 128
      %515 = vxpose.xlu0.b32.cont [14/16] 0.0, 128
      %516 = vxpose.xlu0.b32.cont [15/16] 0.0, 128
      %517 = vxpose.xlu0.b32.end [16/16] 0.0, 128
      %v518 = vpop.trf.xlu0
      %v519 = vpop.trf.xlu0
      %v520 = vpop.trf.xlu0
      %v521 = vpop.trf.xlu0
      %v522 = vpop.trf.xlu0
      %v523 = vpop.trf.xlu0
      %v524 = vpop.trf.xlu0
      %v525 = vpop.trf.xlu0
      %v526 = vpop.trf.xlu0
      %v527 = vpop.trf.xlu0
      %v528 = vpop.trf.xlu0
      %v529 = vpop.trf.xlu0
      %v530 = vpop.trf.xlu0
      %v531 = vpop.trf.xlu0
      %v532 = vpop.trf.xlu0
      %v533 = vpop.trf.xlu0
      %s534 = scalar_lea.vmem %s154, 512
      %535 = vst.msk [vmem:[%s534] sm:$0xff] %vm280, %v486
      %536 = vst.msk [vmem:[%s534 + $0x8] sm:$0xff] %vm280, %v487
      %537 = vst.msk [vmem:[%s534 + $0x10] sm:$0xff] %vm280, %v488
      %538 = vst.msk [vmem:[%s534 + $0x18] sm:$0xff] %vm280, %v489
      %539 = vst.msk [vmem:[%s534 + $0x20] sm:$0xff] %vm280, %v490
      %540 = vst.msk [vmem:[%s534 + $0x28] sm:$0xff] %vm280, %v491
      %541 = vst.msk [vmem:[%s534 + $0x30] sm:$0xff] %vm280, %v492
      %542 = vst.msk [vmem:[%s534 + $0x38] sm:$0xff] %vm280, %v493
      %543 = vst.msk [vmem:[%s534 + $0x40] sm:$0xff] %vm280, %v494
      %544 = vst.msk [vmem:[%s534 + $0x48] sm:$0xff] %vm280, %v495
      %545 = vst.msk [vmem:[%s534 + $0x50] sm:$0xff] %vm280, %v496
      %546 = vst.msk [vmem:[%s534 + $0x58] sm:$0xff] %vm280, %v497
      %547 = vst.msk [vmem:[%s534 + $0x60] sm:$0xff] %vm280, %v498
      %548 = vst.msk [vmem:[%s534 + $0x68] sm:$0xff] %vm280, %v499
      %549 = vst.msk [vmem:[%s534 + $0x70] sm:$0xff] %vm280, %v500
      %550 = vst.msk [vmem:[%s534 + $0x78] sm:$0xff] %vm280, %v501
      %551 = vst.msk [vmem:[%s534 + $0x80] sm:$0xff] %vm280, %v518
      %552 = vst.msk [vmem:[%s534 + $0x88] sm:$0xff] %vm280, %v519
      %553 = vst.msk [vmem:[%s534 + $0x90] sm:$0xff] %vm280, %v520
      %554 = vst.msk [vmem:[%s534 + $0x98] sm:$0xff] %vm280, %v521
      %555 = vst.msk [vmem:[%s534 + $0xa0] sm:$0xff] %vm280, %v522
      %556 = vst.msk [vmem:[%s534 + $0xa8] sm:$0xff] %vm280, %v523
      %557 = vst.msk [vmem:[%s534 + $0xb0] sm:$0xff] %vm280, %v524
      %558 = vst.msk [vmem:[%s534 + $0xb8] sm:$0xff] %vm280, %v525
      %559 = vst.msk [vmem:[%s534 + $0xc0] sm:$0xff] %vm280, %v526
      %560 = vst.msk [vmem:[%s534 + $0xc8] sm:$0xff] %vm280, %v527
      %561 = vst.msk [vmem:[%s534 + $0xd0] sm:$0xff] %vm280, %v528
      %562 = vst.msk [vmem:[%s534 + $0xd8] sm:$0xff] %vm280, %v529
      %563 = vst.msk [vmem:[%s534 + $0xe0] sm:$0xff] %vm280, %v530
      %564 = vst.msk [vmem:[%s534 + $0xe8] sm:$0xff] %vm280, %v531
      %565 = vst.msk [vmem:[%s534 + $0xf0] sm:$0xff] %vm280, %v532
      %566 = vst.msk [vmem:[%s534 + $0xf8] sm:$0xff] %vm280, %v533
      %s567 = smul.u32 32, %s17
      %p568 = scmp.lt.s32.totalorder %s16, 1
      %s569 = scalar_select %p568, %s16, 1
      %p570 = scmp.lt.s32.totalorder %s567, 31
      %s571 = scalar_select %p570, %s567, 31
      %s572 = smul.addr %s569, 96
      %s573 = sadd.s32 %s571, %s572
      %s574 = smul.addr %s573, 8
      %s575 = scalar_lea.vmem %s1, %s574
      // Predicated region
      $region25: #{tpu_custom_call.1} parent=23 // pred_check
        %p576 = pneg %p72
      $region26: #{tpu_custom_call.1} parent=23 // pred_check_branch
        %578 = sbr.rel (%p576) target = $region28
      $region27: #{tpu_custom_call.1} parent=23 // pred_region
        %s579 = smul.u32 32, %s17
      $region28: #{tpu_custom_call.1} parent=23 // pred_fallthru
        _
    $region24: #{tpu_custom_call.1} parent=5 // pred_fallthru
      _
    %p580 = scmp.le.s32.totalorder 2, %s7
    // Predicated region
    $region29: #{tpu_custom_call.1} parent=5 // pred_check
      %p581 = pneg %p580
    $region30: #{tpu_custom_call.1} parent=5 // pred_check_branch
      %583 = sbr.rel (%p581) target = $region32
    $region31: #{tpu_custom_call.1} parent=5 // pred_region
      %s584 = ssub.s32 %s7, 2
      // Predicated region
      $region33: #{tpu_custom_call.1} parent=31 // pred_check
        %p585 = pneg %p78
      $region34: #{tpu_custom_call.1} parent=31 // pred_check_branch
        %587 = sbr.rel (%p585) target = $region36
      $region35: #{tpu_custom_call.1} parent=31 // pred_region
        %s588 = smul.u32 32, %s19
        %p589 = scmp.lt.s32.totalorder %s18, 1
        %s590 = scalar_select %p589, %s18, 1
        %p591 = scmp.lt.s32.totalorder %s588, 31
        %s592 = scalar_select %p591, %s588, 31
        %s593 = smul.addr %s590, 96
        %s594 = sadd.s32 %s592, %s593
        %s595 = smul.addr %s594, 8
        %s596 = scalar_lea.vmem %s1, %s595
      $region36: #{tpu_custom_call.1} parent=31 // pred_fallthru
        _
    $region32: #{tpu_custom_call.1} parent=5 // pred_fallthru
      _
  $region6: #{tpu_custom_call.1} parent=0 // loop_footer
    %s11 = sadd.s32 1, %s7
  $region7: #{tpu_custom_call.1} parent=0 // loop_footer_branch
    %6 = sbr.rel target = $region3
  $region8: #{tpu_custom_call.1} parent=0 // loop_exit
    _

</llo_original>
